<compile_context>
chip_gen: v6e
topology: v6e:2x2x1
jax: 0.10.0
libtpu: 0.0.40
codegen_flags: <defaults>
</compile_context>

<pallas_src>
import functools

import jax
import jax.numpy as jnp
from jax.experimental import pallas as pl
from jax.experimental.pallas import tpu as pltpu


_LANES = 512           # lane-dense last dim (multiple of 128 -> unmasked vst)
_MAX_BLOCK_ROWS = 512  # up to (512, 512) f32 = 1 MiB per tile


def _stats_kernel(x_ref, stats_ref, sum_acc, sq_acc, *, n_total):
    """Pass 1: streaming sum / sum-of-squares of the NaN-filled input."""
    i = pl.program_id(0)

    @pl.when(i == 0)
    def _init():
        sum_acc[...] = jnp.zeros_like(sum_acc)
        sq_acc[...] = jnp.zeros_like(sq_acc)

    x = x_ref[...].astype(jnp.float32)
    filled = jnp.where(jnp.isnan(x), 0.0, x)
    # Full-tile VPU accumulation; cross-lane reduce only happens once at the end.
    sum_acc[...] += filled
    sq_acc[...] += filled * filled

    @pl.when(i == pl.num_programs(0) - 1)
    def _finalize():
        n = jnp.float32(n_total)  # global element count (NOT the per-block size)
        total_sum = jnp.sum(sum_acc[...])
        total_sq = jnp.sum(sq_acc[...])
        mean = total_sum / n
        # var = E[x^2] - mean^2; clamp against tiny negative rounding error.
        var = jnp.maximum(total_sq / n - mean * mean, 0.0)
        inv_std = jax.lax.rsqrt(var)  # std == 0 -> inf, matching PyTorch's behavior
        row = jax.lax.broadcasted_iota(jnp.int32, stats_ref.shape, 0)
        stats_ref[...] = jnp.where(row == 0, mean, inv_std)


def _normalize_kernel(stats_ref, x_ref, o_ref):
    """Pass 2: re-apply NaN fill and normalize with prefetched global stats."""
    mean = stats_ref[0]
    inv_std = stats_ref[1]
    x = x_ref[...].astype(jnp.float32)
    filled = jnp.where(jnp.isnan(x), 0.0, x)
    o_ref[...] = ((filled - mean) * inv_std).astype(o_ref.dtype)


def preprocessing(x):
    """x: float array (NCHW or any shape). Returns (nan_to_zero(x) - mean) / std."""
    orig_shape = x.shape
    orig_dtype = x.dtype
    total = x.size

    lanes = _LANES
    rows = -(-total // lanes)                              # ceil-div
    block_rows = min(_MAX_BLOCK_ROWS, -(-rows // 8) * 8)   # multiple of 8 sublanes
    rows_padded = -(-rows // block_rows) * block_rows
    padded_total = rows_padded * lanes
    num_tiles = rows_padded // block_rows

    flat = x.reshape(-1)
    if padded_total != total:
        # Zero padding: contributes 0 to sum/sumsq; n stays the true element count.
        flat = jnp.pad(flat, (0, padded_total - total))
    x2d = flat.reshape(rows_padded, lanes)

    # ---- Pass 1: tiled reduction -> (mean, inv_std) ----
    stats2d = pl.pallas_call(
        functools.partial(_stats_kernel, n_total=total),
        out_shape=jax.ShapeDtypeStruct((2, 128), jnp.float32),
        grid=(num_tiles,),
        in_specs=[pl.BlockSpec((block_rows, lanes), lambda i: (i, 0))],
        out_specs=pl.BlockSpec((2, 128), lambda i: (0, 0)),  # resident, written once
        scratch_shapes=[
            pltpu.VMEM((block_rows, lanes), jnp.float32),
            pltpu.VMEM((block_rows, lanes), jnp.float32),
        ],
        compiler_params=pltpu.CompilerParams(
            dimension_semantics=("arbitrary",),
            vmem_limit_bytes=32 * 1024 * 1024,
        ),
    )(x2d)

    stats = stats2d[:, 0]  # (2,) f32: [mean, inv_std]

    # ---- Pass 2: tiled elementwise normalize (parallel across cores) ----
    out2d = pl.pallas_call(
        _normalize_kernel,
        out_shape=jax.ShapeDtypeStruct((rows_padded, lanes), orig_dtype),
        grid=(num_tiles,),
        in_specs=[
            pl.BlockSpec(memory_space=pltpu.MemorySpace.SMEM),   # (2,) stats
            pl.BlockSpec((block_rows, lanes), lambda i: (i, 0)),
        ],
        out_specs=pl.BlockSpec((block_rows, lanes), lambda i: (i, 0)),
        compiler_params=pltpu.CompilerParams(
            dimension_semantics=("parallel",),
            vmem_limit_bytes=32 * 1024 * 1024,
        ),
    )(stats, x2d)

    return out2d.reshape(-1)[:total].reshape(orig_shape)


if __name__ == "__main__":
    key = jax.random.PRNGKey(0)
    k1, k2 = jax.random.split(key)

    # Small NCHW input: batch=2, channels=4, spatial=16x16
    x = jax.random.normal(k1, (2, 4, 16, 16), dtype=jnp.float32) * 3.0 + 1.5

    # Inject some NaNs deterministically
    nan_mask = jax.random.bernoulli(k2, p=0.1, shape=x.shape)
    x = jnp.where(nan_mask, jnp.nan, x)

    out = preprocessing(x)
    out = jax.block_until_ready(out)

    # Reference check in plain JAX (same semantics as the PyTorch module)
    filled = jnp.where(jnp.isnan(x), 0.0, x)
    mean = filled.mean()
    std = jnp.sqrt(((filled - mean) ** 2).mean())
    ref = (filled - mean) / std

    assert out.shape == x.shape, "shape mismatch"
    assert not jnp.any(jnp.isnan(out)), "NaNs leaked into output"
    assert jnp.allclose(out, ref, atol=1e-4, rtol=1e-4), "mismatch vs reference"

    print("KERNEL_OK")
</pallas_src>

<mosaic_0001>
module attributes {stable_mosaic.version = 11 : i64} {
  func.func @_stats_kernel(%arg0: i32, %arg1: memref<8x512xf32, #tpu.memory_space<vmem>>, %arg2: memref<2x128xf32, #tpu.memory_space<vmem>>, %arg3: memref<8x512xf32, #tpu.memory_space<vmem>>, %arg4: memref<8x512xf32, #tpu.memory_space<vmem>>) attributes {dimension_semantics = [#tpu.dimension_semantics<arbitrary>], iteration_bounds = array<i64: 1>, scalar_prefetch = 0 : i64, scratch_operands = 2 : i64, tpu.core_type = #tpu.core_type<tc>, window_params = [{transform_indices = @transform_0, window_bounds = array<i64: 8, 512>}, {pipeline_mode = #tpu.pipeline_mode<synchronous>, transform_indices = @transform_1, window_bounds = array<i64: 2, 128>}]} {
    %c0_i32 = arith.constant 0 : i32
    %0 = arith.cmpi eq, %arg0, %c0_i32 : i32
    %1 = arith.extui %0 : i1 to i32
    %c0_i32_0 = arith.constant 0 : i32
    %2 = arith.cmpi ne, %1, %c0_i32_0 : i32
    scf.if %2 {
      %cst_12 = arith.constant 0.000000e+00 : f32
      %17 = vector.broadcast %cst_12 : f32 to vector<8x512xf32>
      %c0_13 = arith.constant 0 : index
      %c0_14 = arith.constant 0 : index
      %18 = vector.load %arg3[%c0_13, %c0_14] : memref<8x512xf32, #tpu.memory_space<vmem>>, vector<8x512xf32>
      tpu.vector_store %arg3[%c0_13, %c0_14], %17 {strides = array<i32>} : memref<8x512xf32, #tpu.memory_space<vmem>>, vector<8x512xf32>,
      %cst_15 = arith.constant 0.000000e+00 : f32
      %19 = vector.broadcast %cst_15 : f32 to vector<8x512xf32>
      %c0_16 = arith.constant 0 : index
      %c0_17 = arith.constant 0 : index
      %20 = vector.load %arg4[%c0_16, %c0_17] : memref<8x512xf32, #tpu.memory_space<vmem>>, vector<8x512xf32>
      tpu.vector_store %arg4[%c0_16, %c0_17], %19 {strides = array<i32>} : memref<8x512xf32, #tpu.memory_space<vmem>>, vector<8x512xf32>,
    } else {
    }
    %c0 = arith.constant 0 : index
    %c0_1 = arith.constant 0 : index
    %3 = vector.load %arg1[%c0, %c0_1] : memref<8x512xf32, #tpu.memory_space<vmem>>, vector<8x512xf32>
    %4 = arith.cmpf one, %3, %3 : vector<8x512xf32>
    %cst = arith.constant 0.000000e+00 : f32
    %5 = vector.broadcast %cst : f32 to vector<8x512xf32>
    %6 = arith.select %4, %5, %3 : vector<8x512xi1>, vector<8x512xf32>
    %c0_2 = arith.constant 0 : index
    %c0_3 = arith.constant 0 : index
    %7 = vector.load %arg3[%c0_2, %c0_3] : memref<8x512xf32, #tpu.memory_space<vmem>>, vector<8x512xf32>
    %8 = arith.addf %7, %6 : vector<8x512xf32>
    %c0_4 = arith.constant 0 : index
    %c0_5 = arith.constant 0 : index
    %9 = vector.load %arg3[%c0_4, %c0_5] : memref<8x512xf32, #tpu.memory_space<vmem>>, vector<8x512xf32>
    tpu.vector_store %arg3[%c0_4, %c0_5], %8 {strides = array<i32>} : memref<8x512xf32, #tpu.memory_space<vmem>>, vector<8x512xf32>,
    %c0_6 = arith.constant 0 : index
    %c0_7 = arith.constant 0 : index
    %10 = vector.load %arg4[%c0_6, %c0_7] : memref<8x512xf32, #tpu.memory_space<vmem>>, vector<8x512xf32>
    %11 = arith.mulf %6, %6 : vector<8x512xf32>
    %12 = arith.addf %10, %11 : vector<8x512xf32>
    %c0_8 = arith.constant 0 : index
    %c0_9 = arith.constant 0 : index
    %13 = vector.load %arg4[%c0_8, %c0_9] : memref<8x512xf32, #tpu.memory_space<vmem>>, vector<8x512xf32>
    tpu.vector_store %arg4[%c0_8, %c0_9], %12 {strides = array<i32>} : memref<8x512xf32, #tpu.memory_space<vmem>>, vector<8x512xf32>,
    %c0_i32_10 = arith.constant 0 : i32
    %14 = arith.cmpi eq, %arg0, %c0_i32_10 : i32
    %15 = arith.extui %14 : i1 to i32
    %c0_i32_11 = arith.constant 0 : i32
    %16 = arith.cmpi ne, %15, %c0_i32_11 : i32
    scf.if %16 {
      %c0_12 = arith.constant 0 : index
      %c0_13 = arith.constant 0 : index
      %17 = vector.load %arg3[%c0_12, %c0_13] : memref<8x512xf32, #tpu.memory_space<vmem>>, vector<8x512xf32>
      %18 = vector.shape_cast %17 : vector<8x512xf32> to vector<1x8x512xf32>
      %cst_14 = arith.constant dense<0.000000e+00> : vector<1xf32>
      %19 = vector.multi_reduction <add>, %18, %cst_14 [1, 2] : vector<1x8x512xf32> to vector<1xf32>
      %20 = vector.shape_cast %19 : vector<1xf32> to vector<1x1x1xf32>
      %21 = vector.extract %20[0, 0, 0] : f32 from vector<1x1x1xf32>
      %c0_15 = arith.constant 0 : index
      %c0_16 = arith.constant 0 : index
      %22 = vector.load %arg4[%c0_15, %c0_16] : memref<8x512xf32, #tpu.memory_space<vmem>>, vector<8x512xf32>
      %23 = vector.shape_cast %22 : vector<8x512xf32> to vector<1x8x512xf32>
      %cst_17 = arith.constant dense<0.000000e+00> : vector<1xf32>
      %24 = vector.multi_reduction <add>, %23, %cst_17 [1, 2] : vector<1x8x512xf32> to vector<1xf32>
      %25 = vector.shape_cast %24 : vector<1xf32> to vector<1x1x1xf32>
      %26 = vector.extract %25[0, 0, 0] : f32 from vector<1x1x1xf32>
      %cst_18 = arith.constant 2.048000e+03 : f32
      %27 = arith.divf %21, %cst_18 : f32
      %cst_19 = arith.constant 2.048000e+03 : f32
      %28 = arith.divf %26, %cst_19 : f32
      %29 = arith.mulf %27, %27 : f32
      %30 = arith.subf %28, %29 : f32
      %cst_20 = arith.constant 0.000000e+00 : f32
      %31 = arith.maximumf %30, %cst_20 : f32
      %32 = math.rsqrt %31 : f32
      %33 = tpu.iota {dimensions = array<i32: 0>} : vector<2x128xi32>
      %c0_i32_21 = arith.constant 0 : i32
      %34 = vector.broadcast %c0_i32_21 : i32 to vector<2x128xi32>
      %35 = arith.cmpi eq, %33, %34 : vector<2x128xi32>
      %36 = vector.broadcast %27 : f32 to vector<2x128xf32>
      %37 = vector.broadcast %32 : f32 to vector<2x128xf32>
      %38 = arith.select %35, %36, %37 : vector<2x128xi1>, vector<2x128xf32>
      %c0_22 = arith.constant 0 : index
      %c0_23 = arith.constant 0 : index
      %39 = vector.load %arg2[%c0_22, %c0_23] : memref<2x128xf32, #tpu.memory_space<vmem>>, vector<2x128xf32>
      tpu.vector_store %arg2[%c0_22, %c0_23], %38 {strides = array<i32>} : memref<2x128xf32, #tpu.memory_space<vmem>>, vector<2x128xf32>,
    } else {
    }
    return
  }
  func.func @transform_0(%arg0: i32) -> (i32, i32) {
    %c0_i32 = arith.constant 0 : i32
    %c0_i32_0 = arith.constant 0 : i32
    return %arg0, %c0_i32 : i32, i32
  }
  func.func @transform_1(%arg0: i32) -> (i32, i32) {
    %c0_i32 = arith.constant 0 : i32
    %c0_i32_0 = arith.constant 0 : i32
    %c0_i32_1 = arith.constant 0 : i32
    return %c0_i32, %c0_i32_0 : i32, i32
  }
}

</mosaic_0001>

<llo_original>
// kernel: tpu_custom_call.1
$region0: #{tpu_custom_call.1}
  #allocation0 [shape = 'u32[]', space=smem, size = 0x4, offset = 0x4, fixed_abs, tag = 'smem constant byte address 0x4 - core index']
  #allocation1 [shape = 'u32[144,128]{1,0:T(1,128)}', space=vmem, size = 0x12000, scoped, tag = 'internal scratch']
  #allocation2 [shape = 'f32[8,512]{1,0:T(8,128)}', space=vmem, size = 0x4000, scoped, tag = 'scratch operand']
  #allocation3 [shape = 'f32[8,512]{1,0:T(8,128)}', space=vmem, size = 0x4000, scoped, tag = 'scratch operand']
  %s0 = inlined_call_operand.hbm [shape: f32[8,512], index: 0, kind: input, shape index: {}]
  %s1 = inlined_call_operand.hbm [shape: f32[2,128], index: 1, kind: output, shape index: {}]
  %s2 = sld [smem:[#allocation0]]
  $region26: #{tpu_custom_call.1} parent=0
    _
  %s4 = ssub.s32 1, %s2
  %s5 = scalar_select 0, %s4, %s2
  $region1: #{tpu_custom_call.1} parent=0
    #allocation4 [shape = 'u8[16384]{0}', space=vmem, size = 0x4000, scoped, tag = 'input window, operand 0, single buffered']
    #allocation5 [shape = 's32[1]{0}', space=sflag, size = 0x4, scoped, tag = 'scoped memory for tpu_custom_call.1']
    #allocation6 [shape = 's32[1]{0}', space=sflag, size = 0x4, scoped, tag = 'scoped memory for tpu_custom_call.1']
    #allocation7 [shape = 'u8[1024]{0}', space=vmem, size = 0x400, scoped, tag = 'output window, operand 0, single buffered']
    %6 = vsyncpa [#allocation5], 0
    %7 = vsyncpa [#allocation6], 0
    // Predicated region
    $region2: #{tpu_custom_call.1} parent=1 // pred_check
      _
    $region3: #{tpu_custom_call.1} parent=1 // pred_check_branch
      %9 = sbr.rel (0) target = $region5
    $region4: #{tpu_custom_call.1} parent=1 // pred_region
      %s11 = ssub.s32 512, 512
      %12 = vsyncadd [#allocation5], %s11
      %s14 = sshll.u32 [#allocation4], 4
      %s15 = int_to_ptr.vmem [resolvable:$true] %s14
      %17 = dma.hbm_to_vmem [thread:$0]  %s0, 512, %s15, [#allocation5]
    $region5: #{tpu_custom_call.1} parent=1 // pred_fallthru
      _
    // Predicated region
    $region6: #{tpu_custom_call.1} parent=1 // pred_check
      _
    $region7: #{tpu_custom_call.1} parent=1 // pred_check_branch
      %19 = sbr.rel (0) target = $region9
    $region8: #{tpu_custom_call.1} parent=1 // pred_region
      %20 = dma.done [#allocation5], 512
    $region9: #{tpu_custom_call.1} parent=1 // pred_fallthru
      _
    %p21 = scmp.eq.s32.totalorder 0, 0
    // Predicated region
    $region10: #{tpu_custom_call.1} parent=1 // pred_check
      %p22 = pneg %p21
    $region11: #{tpu_custom_call.1} parent=1 // pred_check_branch
      %24 = sbr.rel (%p22) target = $region13
    $region12: #{tpu_custom_call.1} parent=1 // pred_region
      %25 = vst [vmem:[#allocation2] sm:$0xff] 0.0
      %26 = vst [vmem:[#allocation2 + $0x8] sm:$0xff] 0.0
      %27 = vst [vmem:[#allocation2 + $0x10] sm:$0xff] 0.0
      %28 = vst [vmem:[#allocation2 + $0x18] sm:$0xff] 0.0
      %29 = vst [vmem:[#allocation3] sm:$0xff] 0.0
      %30 = vst [vmem:[#allocation3 + $0x8] sm:$0xff] 0.0
      %31 = vst [vmem:[#allocation3 + $0x10] sm:$0xff] 0.0
      %32 = vst [vmem:[#allocation3 + $0x18] sm:$0xff] 0.0
    $region13: #{tpu_custom_call.1} parent=1 // pred_fallthru
      _
    %v33 = vld [vmem:[#allocation4] sm:$0xff]
    %v34 = vld [vmem:[#allocation4 + $0x8] sm:$0xff]
    %v35 = vld [vmem:[#allocation4 + $0x10] sm:$0xff]
    %v36 = vld [vmem:[#allocation4 + $0x18] sm:$0xff]
    %vm37 = vcmp.ne.f32.partialorder %v33, %v33
    %vm38 = vcmp.ne.f32.partialorder %v34, %v34
    %vm39 = vcmp.ne.f32.partialorder %v35, %v35
    %vm40 = vcmp.ne.f32.partialorder %v36, %v36
    %v41 = vsel %vm37, 0.0, %v33
    %v42 = vsel %vm38, 0.0, %v34
    %v43 = vsel %vm39, 0.0, %v35
    %v44 = vsel %vm40, 0.0, %v36
    %v45 = vld [vmem:[#allocation2] sm:$0xff]
    %v46 = vld [vmem:[#allocation2 + $0x8] sm:$0xff]
    %v47 = vld [vmem:[#allocation2 + $0x10] sm:$0xff]
    %v48 = vld [vmem:[#allocation2 + $0x18] sm:$0xff]
    %v49 = vadd.f32 %v45, %v41
    %v50 = vadd.f32 %v46, %v42
    %v51 = vadd.f32 %v47, %v43
    %v52 = vadd.f32 %v48, %v44
    %53 = vst [vmem:[#allocation2] sm:$0xff] %v49
    %54 = vst [vmem:[#allocation2 + $0x8] sm:$0xff] %v50
    %55 = vst [vmem:[#allocation2 + $0x10] sm:$0xff] %v51
    %56 = vst [vmem:[#allocation2 + $0x18] sm:$0xff] %v52
    %v57 = vld [vmem:[#allocation3] sm:$0xff]
    %v58 = vld [vmem:[#allocation3 + $0x8] sm:$0xff]
    %v59 = vld [vmem:[#allocation3 + $0x10] sm:$0xff]
    %v60 = vld [vmem:[#allocation3 + $0x18] sm:$0xff]
    %v61 = vmul.f32 %v41, %v41
    %v62 = vmul.f32 %v42, %v42
    %v63 = vmul.f32 %v43, %v43
    %v64 = vmul.f32 %v44, %v44
    %v65 = vadd.f32 %v57, %v61
    %v66 = vadd.f32 %v58, %v62
    %v67 = vadd.f32 %v59, %v63
    %v68 = vadd.f32 %v60, %v64
    %69 = vst [vmem:[#allocation3] sm:$0xff] %v65
    %70 = vst [vmem:[#allocation3 + $0x8] sm:$0xff] %v66
    %71 = vst [vmem:[#allocation3 + $0x10] sm:$0xff] %v67
    %72 = vst [vmem:[#allocation3 + $0x18] sm:$0xff] %v68
    // Predicated region
    $region14: #{tpu_custom_call.1} parent=1 // pred_check
      %p73 = pneg %p21
    $region15: #{tpu_custom_call.1} parent=1 // pred_check_branch
      %75 = sbr.rel (%p73) target = $region17
    $region16: #{tpu_custom_call.1} parent=1 // pred_region
      %v76 = vld [vmem:[#allocation2] sm:$0xff]
      %v77 = vld [vmem:[#allocation2 + $0x8] sm:$0xff]
      %v78 = vld [vmem:[#allocation2 + $0x10] sm:$0xff]
      %v79 = vld [vmem:[#allocation2 + $0x18] sm:$0xff]
      %v80 = vadd.f32 %v76, %v77
      %v81 = vadd.f32 %v80, %v78
      %v82 = vadd.f32 %v81, %v79
      %83 = vadd.xlane.f32.xlu0 %v82
      %v84 = vpop.xlane.xlu0 %83
      %v85 = vrot.slane %v84, 4
      %v86 = vadd.f32 %v84, %v85
      %v87 = vrot.slane %v86, 2
      %v88 = vadd.f32 %v86, %v87
      %v89 = vrot.slane %v88, 1
      %v90 = vadd.f32 %v88, %v89
      %s91 = vtos %v90
      %v92 = vld [vmem:[#allocation3] sm:$0xff]
      %v93 = vld [vmem:[#allocation3 + $0x8] sm:$0xff]
      %v94 = vld [vmem:[#allocation3 + $0x10] sm:$0xff]
      %v95 = vld [vmem:[#allocation3 + $0x18] sm:$0xff]
      %v96 = vadd.f32 %v92, %v93
      %v97 = vadd.f32 %v96, %v94
      %v98 = vadd.f32 %v97, %v95
      %99 = vadd.xlane.f32.xlu0 %v98
      %v100 = vpop.xlane.xlu0 %99
      %v101 = vrot.slane %v100, 4
      %v102 = vadd.f32 %v100, %v101
      %v103 = vrot.slane %v102, 2
      %v104 = vadd.f32 %v102, %v103
      %v105 = vrot.slane %v104, 1
      %v106 = vadd.f32 %v104, %v105
      %s107 = vtos %v106
      %v108 = vrcp.pop 2048.0
      %s109 = vtos %v108
      %s110 = smul.f32 %s91, %s109
      %v111 = vrcp.pop 2048.0
      %s112 = vtos %v111
      %s113 = smul.f32 %s107, %s112
      %s114 = smul.f32 %s110, %s110
      %s115 = ssub.f32 %s113, %s114
      %s116 = smax.f32 %s115, 0.0
      %v117 = vstv %s116
      %v118 = vrsqrt.pop %v117
      %s119 = vtos %v118
      %v120 = vlaneseq
      %v121 = vshrl.u32 %v120, 7
      %vm122 = vcmp.eq.s32.totalorder %v121, 0
      %v123 = vstv %s110
      %v124 = vstv %s119
      %v125 = vsel %vm122, %v123, %v124
      %126 = vst [vmem:[#allocation7] sm:$0x3] %v125
    $region17: #{tpu_custom_call.1} parent=1 // pred_fallthru
      _
    // Predicated region
    $region18: #{tpu_custom_call.1} parent=1 // pred_check
      _
    $region19: #{tpu_custom_call.1} parent=1 // pred_check_branch
      %128 = sbr.rel (0) target = $region21
    $region20: #{tpu_custom_call.1} parent=1 // pred_region
      %s130 = ssub.s32 32, 32
      %131 = vsyncadd [#allocation6], %s130
      %s133 = sshll.u32 [#allocation7], 4
      %s134 = int_to_ptr.vmem [resolvable:$true] %s133
      %136 = dma.vmem_to_hbm [thread:$0]  %s134, 32, %s1, [#allocation6]
    $region21: #{tpu_custom_call.1} parent=1 // pred_fallthru
      _
    // Predicated region
    $region22: #{tpu_custom_call.1} parent=1 // pred_check
      _
    $region23: #{tpu_custom_call.1} parent=1 // pred_check_branch
      %138 = sbr.rel (0) target = $region25
    $region24: #{tpu_custom_call.1} parent=1 // pred_region
      %139 = dma.done [#allocation6], 32
    $region25: #{tpu_custom_call.1} parent=1 // pred_fallthru
      _
    %140 = vsyncpa [#allocation5], 1
    %141 = vsyncpa [#allocation6], 1

</llo_original>
